<compile_context>
chip_gen: v5e
topology: v5e:2x2
jax: 0.10.0
libtpu: 0.0.40
codegen_flags: <defaults>
</compile_context>

<pallas_src>
import math

import jax
import jax.numpy as jnp
from jax.experimental import pallas as pl
from jax.experimental.pallas import tpu as pltpu


def _output_layer_kernel(a_ref, b_ref, o_ref, acc_ref):
    # a_ref: (tm, tk) tile of flattened activations
    # b_ref: (tn, tk) tile of weight (vocab-major, hidden-minor)
    # o_ref: (tm, tn) tile of output logits
    # acc_ref: (tm, tn) f32 accumulator, persistent across the k axis
    k = pl.program_id(2)

    @pl.when(k == 0)
    def _():
        acc_ref[...] = jnp.zeros_like(acc_ref)

    # data(tm,tk) @ weight(tn,tk).T == contract dim 1 of both operands.
    # dot_general lets Mosaic feed the MXU directly (no explicit transpose).
    acc_ref[...] += jax.lax.dot_general(
        a_ref[...],
        b_ref[...],
        dimension_numbers=(((1,), (1,)), ((), ())),
        preferred_element_type=jnp.float32,
    )

    @pl.when(k == pl.num_programs(2) - 1)
    def _():
        o_ref[...] = acc_ref[...].astype(o_ref.dtype)


def _round_up(x: int, m: int) -> int:
    return (x + m - 1) // m * m


def output_layer(
    data: jax.Array,
    weight: jax.Array,
    *,
    tm: int = 256,
    tn: int = 512,
    tk: int = 512,
    compute_dtype=jnp.bfloat16,
) -> jax.Array:
    """Pallas equivalent of OutputLayer.forward: data @ weight.T.

    data:   (..., H)
    weight: (V, H)
    returns (..., V) in data.dtype.

    compute_dtype: dtype fed to the MXU (bf16 default; accumulation stays f32).
                   Pass None to keep the exact input dtype.
    """
    *lead, H = data.shape
    V, Hw = weight.shape
    assert H == Hw, "hidden dims must match"
    M = math.prod(lead) if lead else 1
    out_dtype = data.dtype

    a2d = data.reshape(M, H)
    w = weight
    if compute_dtype is not None:
        a2d = a2d.astype(compute_dtype)
        w = w.astype(compute_dtype)

    # Clamp tiles for small problems so we don't over-pad; keep (8,128) tiling.
    tm_e = min(tm, _round_up(M, 8))
    tn_e = min(tn, _round_up(V, 128))
    tk_e = min(tk, _round_up(H, 128))

    # Pad to tile multiples (zero padding on H contributes 0 to the dot; extra
    # rows/cols of M/V are sliced off afterwards).
    Mp, Vp, Hp = _round_up(M, tm_e), _round_up(V, tn_e), _round_up(H, tk_e)
    if (Mp, Hp) != (M, H):
        a2d = jnp.pad(a2d, ((0, Mp - M), (0, Hp - H)))
    if (Vp, Hp) != (V, H):
        w = jnp.pad(w, ((0, Vp - V), (0, Hp - H)))

    grid = (Mp // tm_e, Vp // tn_e, Hp // tk_e)

    in_bytes = (
        a2d.size * jnp.dtype(a2d.dtype).itemsize
        + w.size * jnp.dtype(w.dtype).itemsize
    )
    out_bytes = Mp * Vp * jnp.dtype(out_dtype).itemsize
    cost = pl.CostEstimate(
        flops=2 * Mp * Vp * Hp,
        transcendentals=0,
        bytes_accessed=in_bytes + out_bytes,
    )

    out2d = pl.pallas_call(
        _output_layer_kernel,
        out_shape=jax.ShapeDtypeStruct((Mp, Vp), out_dtype),
        grid_spec=pltpu.PrefetchScalarGridSpec(
            num_scalar_prefetch=0,
            grid=grid,
            in_specs=[
                pl.BlockSpec((tm_e, tk_e), lambda i, j, k: (i, k)),  # activations
                pl.BlockSpec((tn_e, tk_e), lambda i, j, k: (j, k)),  # weight (V, H)
            ],
            out_specs=pl.BlockSpec((tm_e, tn_e), lambda i, j, k: (i, j)),
            scratch_shapes=[pltpu.VMEM((tm_e, tn_e), jnp.float32)],
        ),
        compiler_params=pltpu.CompilerParams(
            dimension_semantics=("parallel", "parallel", "arbitrary"),
        ),
        cost_estimate=cost,
    )(a2d, w)

    if (Mp, Vp) != (M, V):
        out2d = out2d[:M, :V]
    return out2d.reshape(*lead, V)


if __name__ == "__main__":
    # Small shapes consistent with the module: (batch, seq, hidden) @ (vocab, hidden).T
    B, S, H, V = 2, 8, 256, 256
    key = jax.random.PRNGKey(0)
    k_data, k_w = jax.random.split(key)
    data = jax.random.normal(k_data, (B, S, H), dtype=jnp.float32)
    weight = jax.random.normal(k_w, (V, H), dtype=jnp.float32) * 0.02

    # 1) Exact-dtype path: must match the f32 reference tightly.
    out_f32 = output_layer(data, weight, compute_dtype=None)
    jax.block_until_ready(out_f32)
    ref_f32 = data @ weight.T
    assert out_f32.shape == (B, S, V), out_f32.shape
    assert jnp.allclose(out_f32, ref_f32, atol=1e-4, rtol=1e-4), "f32 mismatch vs reference"

    # 2) Default bf16-MXU path (f32 accumulation): compare against a bf16 reference.
    out_bf16 = output_layer(data, weight)  # compute_dtype=bf16 default
    jax.block_until_ready(out_bf16)
    ref_bf16 = jnp.dot(
        data.reshape(-1, H).astype(jnp.bfloat16),
        weight.astype(jnp.bfloat16).T,
        preferred_element_type=jnp.float32,
    ).reshape(B, S, V).astype(data.dtype)
    assert out_bf16.shape == (B, S, V), out_bf16.shape
    assert jnp.allclose(out_bf16, ref_bf16, atol=1e-2, rtol=1e-2), "bf16 mismatch vs reference"

    print("KERNEL_OK")
</pallas_src>

<mosaic_0001>
module attributes {stable_mosaic.version = 11 : i64} {
  func.func @_output_layer_kernel(%arg0: i32, %arg1: i32, %arg2: i32, %arg3: memref<16x256xf32, #tpu.memory_space<vmem>>, %arg4: memref<256x256xf32, #tpu.memory_space<vmem>>, %arg5: memref<16x256xf32, #tpu.memory_space<vmem>>, %arg6: memref<16x256xf32, #tpu.memory_space<vmem>>) attributes {dimension_semantics = [#tpu.dimension_semantics<parallel>, #tpu.dimension_semantics<parallel>, #tpu.dimension_semantics<arbitrary>], iteration_bounds = array<i64: 1, 1, 1>, scalar_prefetch = 0 : i64, scratch_operands = 1 : i64, tpu.core_type = #tpu.core_type<tc>, window_params = [{transform_indices = @transform_0, window_bounds = array<i64: 16, 256>}, {transform_indices = @transform_1, window_bounds = array<i64: 256, 256>}, {transform_indices = @transform_2, window_bounds = array<i64: 16, 256>}]} {
    %c0_i32 = arith.constant 0 : i32
    %0 = arith.cmpi eq, %arg2, %c0_i32 : i32
    %1 = arith.extui %0 : i1 to i32
    %c0_i32_0 = arith.constant 0 : i32
    %2 = arith.cmpi ne, %1, %c0_i32_0 : i32
    scf.if %2 {
      %cst_10 = arith.constant 0.000000e+00 : f32
      %12 = vector.broadcast %cst_10 : f32 to vector<16x256xf32>
      %c0_11 = arith.constant 0 : index
      %c0_12 = arith.constant 0 : index
      %13 = vector.load %arg6[%c0_11, %c0_12] : memref<16x256xf32, #tpu.memory_space<vmem>>, vector<16x256xf32>
      tpu.vector_store %arg6[%c0_11, %c0_12], %12 {strides = array<i32>} : memref<16x256xf32, #tpu.memory_space<vmem>>, vector<16x256xf32>,
    } else {
    }
    %c0 = arith.constant 0 : index
    %c0_1 = arith.constant 0 : index
    %3 = vector.load %arg6[%c0, %c0_1] : memref<16x256xf32, #tpu.memory_space<vmem>>, vector<16x256xf32>
    %c0_2 = arith.constant 0 : index
    %c0_3 = arith.constant 0 : index
    %4 = vector.load %arg3[%c0_2, %c0_3] : memref<16x256xf32, #tpu.memory_space<vmem>>, vector<16x256xf32>
    %c0_4 = arith.constant 0 : index
    %c0_5 = arith.constant 0 : index
    %5 = vector.load %arg4[%c0_4, %c0_5] : memref<256x256xf32, #tpu.memory_space<vmem>>, vector<256x256xf32>
    %cst = arith.constant dense<0.000000e+00> : vector<16x256xf32>
    %6 = tpu.matmul %4, %5, %cst {dimension_numbers = #tpu.dot_dimension_numbers<[1], [1], [0], [0], [0, 0, 1, 0], [], []>} : vector<16x256xf32>, vector<256x256xf32>, vector<16x256xf32> -> vector<16x256xf32>
    %7 = arith.addf %3, %6 : vector<16x256xf32>
    %c0_6 = arith.constant 0 : index
    %c0_7 = arith.constant 0 : index
    %8 = vector.load %arg6[%c0_6, %c0_7] : memref<16x256xf32, #tpu.memory_space<vmem>>, vector<16x256xf32>
    tpu.vector_store %arg6[%c0_6, %c0_7], %7 {strides = array<i32>} : memref<16x256xf32, #tpu.memory_space<vmem>>, vector<16x256xf32>,
    %c0_i32_8 = arith.constant 0 : i32
    %9 = arith.cmpi eq, %arg2, %c0_i32_8 : i32
    %10 = arith.extui %9 : i1 to i32
    %c0_i32_9 = arith.constant 0 : i32
    %11 = arith.cmpi ne, %10, %c0_i32_9 : i32
    scf.if %11 {
      %c0_10 = arith.constant 0 : index
      %c0_11 = arith.constant 0 : index
      %12 = vector.load %arg6[%c0_10, %c0_11] : memref<16x256xf32, #tpu.memory_space<vmem>>, vector<16x256xf32>
      %c0_12 = arith.constant 0 : index
      %c0_13 = arith.constant 0 : index
      %13 = vector.load %arg5[%c0_12, %c0_13] : memref<16x256xf32, #tpu.memory_space<vmem>>, vector<16x256xf32>
      tpu.vector_store %arg5[%c0_12, %c0_13], %12 {strides = array<i32>} : memref<16x256xf32, #tpu.memory_space<vmem>>, vector<16x256xf32>,
    } else {
    }
    return
  }
  func.func @transform_0(%arg0: i32, %arg1: i32, %arg2: i32) -> (i32, i32) {
    %c0_i32 = arith.constant 0 : i32
    return %arg0, %arg2 : i32, i32
  }
  func.func @transform_1(%arg0: i32, %arg1: i32, %arg2: i32) -> (i32, i32) {
    %c0_i32 = arith.constant 0 : i32
    return %arg1, %arg2 : i32, i32
  }
  func.func @transform_2(%arg0: i32, %arg1: i32, %arg2: i32) -> (i32, i32) {
    %c0_i32 = arith.constant 0 : i32
    return %arg0, %arg1 : i32, i32
  }
}

</mosaic_0001>

<llo_original>
// kernel: tpu_custom_call.1
$region0: #{tpu_custom_call.1}
  #allocation0 [shape = 'u32[]', space=smem, size = 0x4, offset = 0x4, fixed_abs, tag = 'smem constant byte address 0x4 - core index']
  #allocation1 [shape = 'u32[72,128]{1,0:T(1,128)}', space=vmem, size = 0x9000, scoped, tag = 'internal scratch']
  #allocation2 [shape = 'f32[16,256]{1,0:T(8,128)}', space=vmem, size = 0x4000, scoped, tag = 'scratch operand']
  %s0 = inlined_call_operand.hbm [shape: f32[16,256], index: 0, kind: input, shape index: {}]
  %s1 = inlined_call_operand.hbm [shape: f32[256,256], index: 1, kind: input, shape index: {}]
  %s2 = inlined_call_operand.hbm [shape: f32[16,256], index: 2, kind: output, shape index: {}]
  %s3 = sld [smem:[#allocation0]]
  $region34: #{tpu_custom_call.1} parent=0
    _
  %s5 = ssub.s32 1, %s3
  %s6 = scalar_select 0, %s5, %s3
  $region1: #{tpu_custom_call.1} parent=0
    #allocation3 [shape = 'u8[16384]{0}', space=vmem, size = 0x4000, scoped, tag = 'input window, operand 0, single buffered']
    #allocation4 [shape = 's32[1]{0}', space=sflag, size = 0x4, scoped, tag = 'scoped memory for tpu_custom_call.1']
    #allocation5 [shape = 's32[1]{0}', space=sflag, size = 0x4, scoped, tag = 'scoped memory for tpu_custom_call.1']
    #allocation6 [shape = 'u8[262144]{0}', space=vmem, size = 0x40000, scoped, tag = 'input window, operand 1, single buffered']
    #allocation7 [shape = 's32[1]{0}', space=sflag, size = 0x4, scoped, tag = 'scoped memory for tpu_custom_call.1']
    #allocation8 [shape = 'u8[16384]{0}', space=vmem, size = 0x4000, scoped, tag = 'output window, operand 0, single buffered']
    %7 = vsyncpa [#allocation4], 0
    %8 = vsyncpa [#allocation7], 0
    %9 = vsyncpa [#allocation5], 0
    // Predicated region
    $region2: #{tpu_custom_call.1} parent=1 // pred_check
      _
    $region3: #{tpu_custom_call.1} parent=1 // pred_check_branch
      %11 = sbr.rel (0) target = $region5
    $region4: #{tpu_custom_call.1} parent=1 // pred_region
      %13 = vsyncadd [#allocation4], 0
      %s14 = sshll.u32 %s0, 4
      %s15 = int_to_ptr.hbm [resolvable:$true] %s14
      %s16 = sshll.u32 [#allocation3], 4
      %s17 = int_to_ptr.vmem [resolvable:$true] %s16
      %22 = dma.hbm_to_vmem [thread:$0]  %s15, 512, %s17, [#allocation4], 256, 256, 16
    $region5: #{tpu_custom_call.1} parent=1 // pred_fallthru
      _
    // Predicated region
    $region6: #{tpu_custom_call.1} parent=1 // pred_check
      _
    $region7: #{tpu_custom_call.1} parent=1 // pred_check_branch
      %24 = sbr.rel (0) target = $region9
    $region8: #{tpu_custom_call.1} parent=1 // pred_region
      %26 = vsyncadd [#allocation7], 0
      %s27 = sshll.u32 %s1, 4
      %s28 = int_to_ptr.hbm [resolvable:$true] %s27
      %s29 = sshll.u32 [#allocation6], 4
      %s30 = int_to_ptr.vmem [resolvable:$true] %s29
      %35 = dma.hbm_to_vmem [thread:$0]  %s28, 8192, %s30, [#allocation7], 256, 256, 16
    $region9: #{tpu_custom_call.1} parent=1 // pred_fallthru
      _
    // Predicated region
    $region10: #{tpu_custom_call.1} parent=1 // pred_check
      _
    $region11: #{tpu_custom_call.1} parent=1 // pred_check_branch
      %37 = sbr.rel (0) target = $region13
    $region12: #{tpu_custom_call.1} parent=1 // pred_region
      %39 = dma.done [#allocation4], 512
    $region13: #{tpu_custom_call.1} parent=1 // pred_fallthru
      _
    // Predicated region
    $region14: #{tpu_custom_call.1} parent=1 // pred_check
      _
    $region15: #{tpu_custom_call.1} parent=1 // pred_check_branch
      %41 = sbr.rel (0) target = $region17
    $region16: #{tpu_custom_call.1} parent=1 // pred_region
      %43 = dma.done [#allocation7], 8192
    $region17: #{tpu_custom_call.1} parent=1 // pred_fallthru
      _
    %p44 = scmp.eq.s32.totalorder 0, 0
    // Predicated region
    $region18: #{tpu_custom_call.1} parent=1 // pred_check
      %p45 = pneg %p44
    $region19: #{tpu_custom_call.1} parent=1 // pred_check_branch
      %47 = sbr.rel (%p45) target = $region21
    $region20: #{tpu_custom_call.1} parent=1 // pred_region
      %48 = vst [vmem:[#allocation2] sm:$0xff] 0.0
      %49 = vst [vmem:[#allocation2 + $0x8] sm:$0xff] 0.0
      %50 = vst [vmem:[#allocation2 + $0x10] sm:$0xff] 0.0
      %51 = vst [vmem:[#allocation2 + $0x18] sm:$0xff] 0.0
    $region21: #{tpu_custom_call.1} parent=1 // pred_fallthru
      _
    %v52 = vld [vmem:[#allocation2] sm:$0xff]
    %v53 = vld [vmem:[#allocation2 + $0x8] sm:$0xff]
    %v54 = vld [vmem:[#allocation2 + $0x10] sm:$0xff]
    %v55 = vld [vmem:[#allocation2 + $0x18] sm:$0xff]
    %v56 = vld [vmem:[#allocation3] sm:$0xff]
    %v57 = vld [vmem:[#allocation3 + $0x8] sm:$0xff]
    %v58 = vld [vmem:[#allocation3 + $0x10] sm:$0xff]
    %v59 = vld [vmem:[#allocation3 + $0x18] sm:$0xff]
    %v60 = vld [vmem:[#allocation6] sm:$0xff]
    %v61 = vld [vmem:[#allocation6 + $0x8] sm:$0xff]
    %v62 = vld [vmem:[#allocation6 + $0x10] sm:$0xff]
    %v63 = vld [vmem:[#allocation6 + $0x18] sm:$0xff]
    %v64 = vld [vmem:[#allocation6 + $0x20] sm:$0xff]
    %v65 = vld [vmem:[#allocation6 + $0x28] sm:$0xff]
    %v66 = vld [vmem:[#allocation6 + $0x30] sm:$0xff]
    %v67 = vld [vmem:[#allocation6 + $0x38] sm:$0xff]
    %v68 = vld [vmem:[#allocation6 + $0x40] sm:$0xff]
    %v69 = vld [vmem:[#allocation6 + $0x48] sm:$0xff]
    %v70 = vld [vmem:[#allocation6 + $0x50] sm:$0xff]
    %v71 = vld [vmem:[#allocation6 + $0x58] sm:$0xff]
    %v72 = vld [vmem:[#allocation6 + $0x60] sm:$0xff]
    %v73 = vld [vmem:[#allocation6 + $0x68] sm:$0xff]
    %v74 = vld [vmem:[#allocation6 + $0x70] sm:$0xff]
    %v75 = vld [vmem:[#allocation6 + $0x78] sm:$0xff]
    %v76 = vld [vmem:[#allocation6 + $0x80] sm:$0xff]
    %v77 = vld [vmem:[#allocation6 + $0x88] sm:$0xff]
    %v78 = vld [vmem:[#allocation6 + $0x90] sm:$0xff]
    %v79 = vld [vmem:[#allocation6 + $0x98] sm:$0xff]
    %v80 = vld [vmem:[#allocation6 + $0xa0] sm:$0xff]
    %v81 = vld [vmem:[#allocation6 + $0xa8] sm:$0xff]
    %v82 = vld [vmem:[#allocation6 + $0xb0] sm:$0xff]
    %v83 = vld [vmem:[#allocation6 + $0xb8] sm:$0xff]
    %v84 = vld [vmem:[#allocation6 + $0xc0] sm:$0xff]
    %v85 = vld [vmem:[#allocation6 + $0xc8] sm:$0xff]
    %v86 = vld [vmem:[#allocation6 + $0xd0] sm:$0xff]
    %v87 = vld [vmem:[#allocation6 + $0xd8] sm:$0xff]
    %v88 = vld [vmem:[#allocation6 + $0xe0] sm:$0xff]
    %v89 = vld [vmem:[#allocation6 + $0xe8] sm:$0xff]
    %v90 = vld [vmem:[#allocation6 + $0xf0] sm:$0xff]
    %v91 = vld [vmem:[#allocation6 + $0xf8] sm:$0xff]
    %v92 = vld [vmem:[#allocation6 + $0x100] sm:$0xff]
    %v93 = vld [vmem:[#allocation6 + $0x108] sm:$0xff]
    %v94 = vld [vmem:[#allocation6 + $0x110] sm:$0xff]
    %v95 = vld [vmem:[#allocation6 + $0x118] sm:$0xff]
    %v96 = vld [vmem:[#allocation6 + $0x120] sm:$0xff]
    %v97 = vld [vmem:[#allocation6 + $0x128] sm:$0xff]
    %v98 = vld [vmem:[#allocation6 + $0x130] sm:$0xff]
    %v99 = vld [vmem:[#allocation6 + $0x138] sm:$0xff]
    %v100 = vld [vmem:[#allocation6 + $0x140] sm:$0xff]
    %v101 = vld [vmem:[#allocation6 + $0x148] sm:$0xff]
    %v102 = vld [vmem:[#allocation6 + $0x150] sm:$0xff]
    %v103 = vld [vmem:[#allocation6 + $0x158] sm:$0xff]
    %v104 = vld [vmem:[#allocation6 + $0x160] sm:$0xff]
    %v105 = vld [vmem:[#allocation6 + $0x168] sm:$0xff]
    %v106 = vld [vmem:[#allocation6 + $0x170] sm:$0xff]
    %v107 = vld [vmem:[#allocation6 + $0x178] sm:$0xff]
    %v108 = vld [vmem:[#allocation6 + $0x180] sm:$0xff]
    %v109 = vld [vmem:[#allocation6 + $0x188] sm:$0xff]
    %v110 = vld [vmem:[#allocation6 + $0x190] sm:$0xff]
    %v111 = vld [vmem:[#allocation6 + $0x198] sm:$0xff]
    %v112 = vld [vmem:[#allocation6 + $0x1a0] sm:$0xff]
    %v113 = vld [vmem:[#allocation6 + $0x1a8] sm:$0xff]
    %v114 = vld [vmem:[#allocation6 + $0x1b0] sm:$0xff]
    %v115 = vld [vmem:[#allocation6 + $0x1b8] sm:$0xff]
    %v116 = vld [vmem:[#allocation6 + $0x1c0] sm:$0xff]
    %v117 = vld [vmem:[#allocation6 + $0x1c8] sm:$0xff]
    %v118 = vld [vmem:[#allocation6 + $0x1d0] sm:$0xff]
    %v119 = vld [vmem:[#allocation6 + $0x1d8] sm:$0xff]
    %v120 = vld [vmem:[#allocation6 + $0x1e0] sm:$0xff]
    %v121 = vld [vmem:[#allocation6 + $0x1e8] sm:$0xff]
    %v122 = vld [vmem:[#allocation6 + $0x1f0] sm:$0xff]
    %v123 = vld [vmem:[#allocation6 + $0x1f8] sm:$0xff]
    %124 = vmatpush.xpose.msra.mxu0 %v90
    %125 = vmatpush.xpose.msra.mxu0 %v88
    %126 = vmatpush.xpose.msra.mxu0 %v86
    %127 = vmatpush.xpose.msra.mxu0 %v84
    %128 = vmatpush.xpose.msra.mxu0 %v82
    %129 = vmatpush.xpose.msra.mxu0 %v80
    %130 = vmatpush.xpose.msra.mxu0 %v78
    %131 = vmatpush.xpose.msra.mxu0 %v76
    %132 = vmatpush.xpose.msra.mxu0 %v74
    %133 = vmatpush.xpose.msra.mxu0 %v72
    %134 = vmatpush.xpose.msra.mxu0 %v70
    %135 = vmatpush.xpose.msra.mxu0 %v68
    %136 = vmatpush.xpose.msra.mxu0 %v66
    %137 = vmatpush.xpose.msra.mxu0 %v64
    %138 = vmatpush.xpose.msra.mxu0 %v62
    %139 = vmatpush.xpose.msra.mxu0 %v60
    %140 = vmatmul.f32.gmra.mxu0 %v56
    %v141 = vpop.f32.mrf.mxu0
    %v142 = vadd.f32 0.0, %v141
    %143 = vmatmul.f32.gmra.mxu0 %v58
    %v144 = vpop.f32.mrf.mxu0
    %v145 = vadd.f32 0.0, %v144
    %146 = vdwg.mxu0
    %147 = vmatpush.xpose.msra.mxu0 %v91
    %148 = vmatpush.xpose.msra.mxu0 %v89
    %149 = vmatpush.xpose.msra.mxu0 %v87
    %150 = vmatpush.xpose.msra.mxu0 %v85
    %151 = vmatpush.xpose.msra.mxu0 %v83
    %152 = vmatpush.xpose.msra.mxu0 %v81
    %153 = vmatpush.xpose.msra.mxu0 %v79
    %154 = vmatpush.xpose.msra.mxu0 %v77
    %155 = vmatpush.xpose.msra.mxu0 %v75
    %156 = vmatpush.xpose.msra.mxu0 %v73
    %157 = vmatpush.xpose.msra.mxu0 %v71
    %158 = vmatpush.xpose.msra.mxu0 %v69
    %159 = vmatpush.xpose.msra.mxu0 %v67
    %160 = vmatpush.xpose.msra.mxu0 %v65
    %161 = vmatpush.xpose.msra.mxu0 %v63
    %162 = vmatpush.xpose.msra.mxu0 %v61
    %163 = vmatmul.f32.gmra.mxu0 %v57
    %v164 = vpop.f32.mrf.mxu0
    %v165 = vadd.f32 %v142, %v164
    %166 = vmatmul.f32.gmra.mxu0 %v59
    %v167 = vpop.f32.mrf.mxu0
    %v168 = vadd.f32 %v145, %v167
    %169 = vdwg.mxu0
    %170 = vmatpush.xpose.msra.mxu0 %v122
    %171 = vmatpush.xpose.msra.mxu0 %v120
    %172 = vmatpush.xpose.msra.mxu0 %v118
    %173 = vmatpush.xpose.msra.mxu0 %v116
    %174 = vmatpush.xpose.msra.mxu0 %v114
    %175 = vmatpush.xpose.msra.mxu0 %v112
    %176 = vmatpush.xpose.msra.mxu0 %v110
    %177 = vmatpush.xpose.msra.mxu0 %v108
    %178 = vmatpush.xpose.msra.mxu0 %v106
    %179 = vmatpush.xpose.msra.mxu0 %v104
    %180 = vmatpush.xpose.msra.mxu0 %v102
    %181 = vmatpush.xpose.msra.mxu0 %v100
    %182 = vmatpush.xpose.msra.mxu0 %v98
    %183 = vmatpush.xpose.msra.mxu0 %v96
    %184 = vmatpush.xpose.msra.mxu0 %v94
    %185 = vmatpush.xpose.msra.mxu0 %v92
    %186 = vmatmul.f32.gmra.mxu0 %v56
    %v187 = vpop.f32.mrf.mxu0
    %v188 = vadd.f32 0.0, %v187
    %189 = vmatmul.f32.gmra.mxu0 %v58
    %v190 = vpop.f32.mrf.mxu0
    %v191 = vadd.f32 0.0, %v190
    %192 = vdwg.mxu0
    %193 = vmatpush.xpose.msra.mxu0 %v123
    %194 = vmatpush.xpose.msra.mxu0 %v121
    %195 = vmatpush.xpose.msra.mxu0 %v119
    %196 = vmatpush.xpose.msra.mxu0 %v117
    %197 = vmatpush.xpose.msra.mxu0 %v115
    %198 = vmatpush.xpose.msra.mxu0 %v113
    %199 = vmatpush.xpose.msra.mxu0 %v111
    %200 = vmatpush.xpose.msra.mxu0 %v109
    %201 = vmatpush.xpose.msra.mxu0 %v107
    %202 = vmatpush.xpose.msra.mxu0 %v105
    %203 = vmatpush.xpose.msra.mxu0 %v103
    %204 = vmatpush.xpose.msra.mxu0 %v101
    %205 = vmatpush.xpose.msra.mxu0 %v99
    %206 = vmatpush.xpose.msra.mxu0 %v97
    %207 = vmatpush.xpose.msra.mxu0 %v95
    %208 = vmatpush.xpose.msra.mxu0 %v93
    %209 = vmatmul.f32.gmra.mxu0 %v57
    %v210 = vpop.f32.mrf.mxu0
    %v211 = vadd.f32 %v188, %v210
    %212 = vmatmul.f32.gmra.mxu0 %v59
    %v213 = vpop.f32.mrf.mxu0
    %v214 = vadd.f32 %v191, %v213
    %215 = vdwg.mxu0
    %v216 = vadd.f32 %v52, %v165
    %v217 = vadd.f32 %v53, %v211
    %v218 = vadd.f32 %v54, %v168
    %v219 = vadd.f32 %v55, %v214
    %220 = vst [vmem:[#allocation2] sm:$0xff] %v216
    %221 = vst [vmem:[#allocation2 + $0x8] sm:$0xff] %v217
    %222 = vst [vmem:[#allocation2 + $0x10] sm:$0xff] %v218
    %223 = vst [vmem:[#allocation2 + $0x18] sm:$0xff] %v219
    // Predicated region
    $region22: #{tpu_custom_call.1} parent=1 // pred_check
      %p224 = pneg %p44
    $region23: #{tpu_custom_call.1} parent=1 // pred_check_branch
      %226 = sbr.rel (%p224) target = $region25
    $region24: #{tpu_custom_call.1} parent=1 // pred_region
      %v227 = vld [vmem:[#allocation2] sm:$0xff]
      %v228 = vld [vmem:[#allocation2 + $0x8] sm:$0xff]
      %v229 = vld [vmem:[#allocation2 + $0x10] sm:$0xff]
      %v230 = vld [vmem:[#allocation2 + $0x18] sm:$0xff]
      %231 = vst [vmem:[#allocation8] sm:$0xff] %v227
      %232 = vst [vmem:[#allocation8 + $0x8] sm:$0xff] %v228
      %233 = vst [vmem:[#allocation8 + $0x10] sm:$0xff] %v229
      %234 = vst [vmem:[#allocation8 + $0x18] sm:$0xff] %v230
    $region25: #{tpu_custom_call.1} parent=1 // pred_fallthru
      _
    // Predicated region
    $region26: #{tpu_custom_call.1} parent=1 // pred_check
      _
    $region27: #{tpu_custom_call.1} parent=1 // pred_check_branch
      %236 = sbr.rel (0) target = $region29
    $region28: #{tpu_custom_call.1} parent=1 // pred_region
      %238 = vsyncadd [#allocation5], 0
      %s239 = sshll.u32 [#allocation8], 4
      %s240 = int_to_ptr.vmem [resolvable:$true] %s239
      %s241 = sshll.u32 %s2, 4
      %s242 = int_to_ptr.hbm [resolvable:$true] %s241
      %247 = dma.vmem_to_hbm [thread:$0]  %s240, 512, %s242, [#allocation5], 256, 256, 16
    $region29: #{tpu_custom_call.1} parent=1 // pred_fallthru
      _
    // Predicated region
    $region30: #{tpu_custom_call.1} parent=1 // pred_check
      _
    $region31: #{tpu_custom_call.1} parent=1 // pred_check_branch
      %249 = sbr.rel (0) target = $region33
    $region32: #{tpu_custom_call.1} parent=1 // pred_region
      %251 = dma.done [#allocation5], 512
    $region33: #{tpu_custom_call.1} parent=1 // pred_fallthru
      _
    %252 = vsyncpa [#allocation4], 1
    %253 = vsyncpa [#allocation7], 1
    %254 = vsyncpa [#allocation5], 1

</llo_original>
